<compile_context>
chip_gen: v6e
topology: v6e:2x2x1
jax: 0.10.0
libtpu: 0.0.40
codegen_flags: <defaults>
</compile_context>

<pallas_src>
import math

import jax
import jax.numpy as jnp
from jax.experimental import pallas as pl
from jax.experimental.pallas import tpu as pltpu


def _round_up(x, m):
    return (x + m - 1) // m * m


def _cdiv(a, b):
    return (a + b - 1) // b


def _vmem_cap_bytes():
    # Physical VMEM per TensorCore; conservative fallback if the query fails.
    try:
        return int(pltpu.get_tpu_info().vmem_capacity_bytes)
    except Exception:
        return 64 << 20  # v7x floor; safe (conservative) on v5e/v6e too


def _relation_modify_kernel(x_ref, w1_ref, b1_ref, w2_ref, b2_ref, o_ref):
    # Two MXU matmuls with f32 accumulation; bias add + LeakyReLU in f32.
    x = x_ref[...].astype(w1_ref.dtype)                               # in-kernel cast
    h = jnp.dot(x, w1_ref[...], preferred_element_type=jnp.float32)  # [tile, hid_w]
    h = h + b1_ref[...]                                               # f32 bias
    h = jnp.where(h > 0, h, 0.01 * h)            # LeakyReLU, torch default slope
    h = h.astype(w2_ref.dtype)
    o = jnp.dot(h, w2_ref[...], preferred_element_type=jnp.float32)  # [tile, out_w]
    o = o + b2_ref[...]
    o_ref[...] = o.astype(o_ref.dtype)


def prepare_relation_modify_params(w1, b1, w2, b2, compute_dtype=jnp.float32):
    """One-time parameter prep (call OUTSIDE the hot path).

    w1: [hidden, indim], b1: [hidden], w2: [indim, hidden], b2: [indim]
    (PyTorch nn.Linear layout).  Builds:
      * "unpacked" weights: W1^T [indim, hidden_p], W2^T [hidden_p, indim]
        (hidden zero-padded to a multiple of 128 -- exact: LeakyReLU(0)=0 and
        the padded rows of W2^T are zero).
      * "packed" weights when 128 % indim == 0 and indim < 128:
        pack = 128 // indim logical rows per 128-wide lane row, with
        pack-replicated block-diagonal W1/W2 so streamed x/out are lane-dense.
    Weights are cast to compute_dtype; biases stay f32 (added to the f32 acc).
    """
    hidden, indim = w1.shape
    assert w2.shape == (indim, hidden) and b1.shape == (hidden,) and b2.shape == (indim,)

    w1_t = jnp.asarray(w1, jnp.float32).T           # [indim, hidden]
    w2_t = jnp.asarray(w2, jnp.float32).T           # [hidden, indim]
    b1_f = jnp.asarray(b1, jnp.float32)
    b2_f = jnp.asarray(b2, jnp.float32)

    # --- unpacked (general) variant: true lane width for x/out ---
    hidden_p = _round_up(hidden, 128)
    w1_u = jnp.zeros((indim, hidden_p), jnp.float32).at[:, :hidden].set(w1_t)
    w2_u = jnp.zeros((hidden_p, indim), jnp.float32).at[:hidden, :].set(w2_t)
    b1_u = jnp.zeros((1, hidden_p), jnp.float32).at[0, :hidden].set(b1_f)
    b2_u = b2_f.reshape(1, indim)
    unpacked = (w1_u.astype(compute_dtype), b1_u, w2_u.astype(compute_dtype), b2_u)

    # --- packed variant: pack logical rows per 128-wide lane row ---
    pack = 128 // indim if (indim <= 128 and 128 % indim == 0) else 1
    packed = None
    if pack > 1:
        in_w = pack * indim                          # == 128
        hid_w = _round_up(pack * hidden, 128)
        w1_bd = jnp.zeros((in_w, hid_w), jnp.float32)
        w2_bd = jnp.zeros((hid_w, in_w), jnp.float32)
        b1_bd = jnp.zeros((1, hid_w), jnp.float32)
        for p in range(pack):
            w1_bd = w1_bd.at[p * indim:(p + 1) * indim,
                             p * hidden:(p + 1) * hidden].set(w1_t)
            w2_bd = w2_bd.at[p * hidden:(p + 1) * hidden,
                             p * indim:(p + 1) * indim].set(w2_t)
            b1_bd = b1_bd.at[0, p * hidden:(p + 1) * hidden].set(b1_f)
        b2_bd = jnp.tile(b2_f, pack).reshape(1, in_w)
        packed = (w1_bd.astype(compute_dtype), b1_bd, w2_bd.astype(compute_dtype), b2_bd)

    return dict(indim=indim, hidden=hidden, pack=pack,
                compute_dtype=compute_dtype, unpacked=unpacked, packed=packed)


def relation_modify(x, params, *, tile_rows=None, out_dtype=None):
    """x: [..., indim] -> [..., indim]  (same semantics as RelationModify.forward)."""
    indim = params["indim"]
    compute_dtype = params["compute_dtype"]
    assert x.shape[-1] == indim
    lead = x.shape[:-1]
    n = int(math.prod(lead)) if lead else 1
    out_dtype = jnp.dtype(out_dtype) if out_dtype is not None else x.dtype
    if n == 0:
        return jnp.zeros((*lead, indim), out_dtype)

    pack = params["pack"]
    use_packed = (pack > 1) and (params["packed"] is not None) and (n % pack == 0)
    if use_packed:
        w1, b1, w2, b2 = params["packed"]
        x2 = x.reshape(n // pack, pack * indim)      # free (contiguous) reshape
    else:
        w1, b1, w2, b2 = params["unpacked"]
        x2 = x.reshape(n, indim)

    n_rows, in_w = x2.shape
    hid_w = w1.shape[1]
    out_w = w2.shape[1]
    in_isz = x2.dtype.itemsize
    out_isz = jnp.dtype(out_dtype).itemsize
    w_isz = jnp.dtype(compute_dtype).itemsize

    # Resident parameter footprint (single-buffered via pl.Buffered(1)).
    weight_bytes = (w1.size + w2.size) * w_isz + (b1.size + b2.size) * 4
    # TODO(synk): if weight_bytes ever approaches ~1/3 of VMEM (very large indim),
    # add a K/N-tiled fallback with an f32 accumulator scratch instead of keeping
    # both weight matrices VMEM-resident.

    cap = _vmem_cap_bytes()
    sub = 32  # row-tile multiple covering f32(8)/bf16(16)/int8(32) sublane packs
    target = tile_rows if tile_rows is not None else (
        2048 if jnp.dtype(compute_dtype) == jnp.bfloat16 else 1024)
    target = max(sub, (int(target) // sub) * sub)
    bytes_per_row = in_w * in_isz + out_w * out_isz
    avail = cap - weight_bytes - (16 << 20)
    max_by_vmem = max(sub, (avail // (2 * bytes_per_row)) // sub * sub) if avail > 0 else sub
    tile = min(target, max_by_vmem)
    if n_rows >= 2 * sub:
        # Ensure >= 2 grid steps so the "parallel" row axis shards across v7x TCs.
        tile = min(tile, _round_up(_cdiv(n_rows, 2), sub))
    tile = min(tile, n_rows)                         # full-extent block when rows are few

    grid = (_cdiv(n_rows, tile),)

    flops = 2 * n_rows * hid_w * (in_w + out_w)      # two matmuls
    bytes_accessed = n_rows * in_w * in_isz + n_rows * out_w * out_isz + weight_bytes
    vmem_limit = int(min(max(weight_bytes + 2 * tile * bytes_per_row + (8 << 20), 16 << 20),
                         cap - (8 << 20)))

    out2 = pl.pallas_call(
        _relation_modify_kernel,
        out_shape=jax.ShapeDtypeStruct((n_rows, out_w), out_dtype),
        grid=grid,
        in_specs=[
            pl.BlockSpec((tile, in_w), lambda i: (i, 0)),                 # streamed x tiles
            pl.BlockSpec(w1.shape, lambda i: (0, 0), pipeline_mode=pl.Buffered(1)),  # W1
            pl.BlockSpec(b1.shape, lambda i: (0, 0), pipeline_mode=pl.Buffered(1)),  # b1
            pl.BlockSpec(w2.shape, lambda i: (0, 0), pipeline_mode=pl.Buffered(1)),  # W2
            pl.BlockSpec(b2.shape, lambda i: (0, 0), pipeline_mode=pl.Buffered(1)),  # b2
        ],
        out_specs=pl.BlockSpec((tile, out_w), lambda i: (i, 0)),
        compiler_params=pltpu.CompilerParams(
            dimension_semantics=("parallel",),
            vmem_limit_bytes=vmem_limit),
        cost_estimate=pl.CostEstimate(
            flops=int(flops), transcendentals=0, bytes_accessed=int(bytes_accessed)),
    )(x2, w1, b1, w2, b2)

    return out2.reshape(*lead, indim)


def reference(x, w1, b1, w2, b2):
    h = x @ w1.T + b1
    h = jnp.where(h > 0, h, 0.01 * h)
    return h @ w2.T + b2


if __name__ == "__main__":
    indim, scale = 32, 2
    hidden = indim // scale
    batch, seq = 4, 8

    key = jax.random.PRNGKey(0)
    kx, k1, kb1, k2, kb2, kx2 = jax.random.split(key, 6)

    x = jax.random.normal(kx, (batch, seq, indim), dtype=jnp.float32)
    # nn.Linear layout: weight (out, in), bias (out,)
    w1 = jax.random.normal(k1, (hidden, indim), dtype=jnp.float32) * 0.1
    b1 = jax.random.normal(kb1, (hidden,), dtype=jnp.float32) * 0.1
    w2 = jax.random.normal(k2, (indim, hidden), dtype=jnp.float32) * 0.1
    b2 = jax.random.normal(kb2, (indim,), dtype=jnp.float32) * 0.1

    ref = reference(x, w1, b1, w2, b2)

    # f32 compute, packed (lane-dense) path: 32 logical rows, pack=4 -> (8, 128) tiles.
    params_f32 = prepare_relation_modify_params(w1, b1, w2, b2, compute_dtype=jnp.float32)
    out = jax.block_until_ready(relation_modify(x, params_f32))
    assert out.shape == (batch, seq, indim)
    assert jnp.allclose(out, ref, atol=1e-5, rtol=1e-5), "f32 packed mismatch vs reference"

    # f32 compute, unpacked fallback path (row count not divisible by pack).
    x_odd = jax.random.normal(kx2, (7, indim), dtype=jnp.float32)
    ref_odd = reference(x_odd, w1, b1, w2, b2)
    out_odd = jax.block_until_ready(relation_modify(x_odd, params_f32))
    assert out_odd.shape == (7, indim)
    assert jnp.allclose(out_odd, ref_odd, atol=1e-5, rtol=1e-5), "f32 unpacked mismatch vs reference"

    # bf16 compute path (v6e/v7x MXU rate; f32 accumulation + f32 bias/LeakyReLU).
    params_bf16 = prepare_relation_modify_params(w1, b1, w2, b2, compute_dtype=jnp.bfloat16)
    out_bf16 = jax.block_until_ready(relation_modify(x, params_bf16))
    assert out_bf16.shape == (batch, seq, indim)
    assert jnp.allclose(out_bf16, ref, atol=5e-2, rtol=5e-2), "bf16 mismatch vs reference"

    print("KERNEL_OK")
</pallas_src>

<mosaic_0001>
module attributes {stable_mosaic.version = 11 : i64} {
  func.func @_relation_modify_kernel(%arg0: i32, %arg1: memref<8x128xf32, #tpu.memory_space<vmem>>, %arg2: memref<128x128xf32, #tpu.memory_space<vmem>>, %arg3: memref<1x128xf32, #tpu.memory_space<vmem>>, %arg4: memref<128x128xf32, #tpu.memory_space<vmem>>, %arg5: memref<1x128xf32, #tpu.memory_space<vmem>>, %arg6: memref<8x128xf32, #tpu.memory_space<vmem>>) attributes {dimension_semantics = [#tpu.dimension_semantics<parallel>], iteration_bounds = array<i64: 1>, scalar_prefetch = 0 : i64, scratch_operands = 0 : i64, tpu.core_type = #tpu.core_type<tc>, window_params = [{transform_indices = @transform_0, window_bounds = array<i64: 8, 128>}, {pipeline_mode = #tpu.pipeline_mode<synchronous>, transform_indices = @transform_1, window_bounds = array<i64: 128, 128>}, {pipeline_mode = #tpu.pipeline_mode<synchronous>, transform_indices = @transform_2, window_bounds = array<i64: 1, 128>}, {pipeline_mode = #tpu.pipeline_mode<synchronous>, transform_indices = @transform_3, window_bounds = array<i64: 128, 128>}, {pipeline_mode = #tpu.pipeline_mode<synchronous>, transform_indices = @transform_4, window_bounds = array<i64: 1, 128>}, {transform_indices = @transform_5, window_bounds = array<i64: 8, 128>}]} {
    %c0 = arith.constant 0 : index
    %c0_0 = arith.constant 0 : index
    %0 = vector.load %arg1[%c0, %c0_0] : memref<8x128xf32, #tpu.memory_space<vmem>>, vector<8x128xf32>
    %c0_1 = arith.constant 0 : index
    %c0_2 = arith.constant 0 : index
    %1 = vector.load %arg2[%c0_1, %c0_2] : memref<128x128xf32, #tpu.memory_space<vmem>>, vector<128x128xf32>
    %cst = arith.constant dense<0.000000e+00> : vector<8x128xf32>
    %2 = tpu.matmul %0, %1, %cst {dimension_numbers = #tpu.dot_dimension_numbers<[1], [0], [0], [1], [0, 0, 1, 1], [], []>} : vector<8x128xf32>, vector<128x128xf32>, vector<8x128xf32> -> vector<8x128xf32>
    %c0_3 = arith.constant 0 : index
    %c0_4 = arith.constant 0 : index
    %3 = vector.load %arg3[%c0_3, %c0_4] : memref<1x128xf32, #tpu.memory_space<vmem>>, vector<1x128xf32>
    %4 = vector.broadcast %3 : vector<1x128xf32> to vector<8x128xf32>
    %5 = arith.addf %2, %4 : vector<8x128xf32>
    %cst_5 = arith.constant 0.000000e+00 : f32
    %6 = vector.broadcast %cst_5 : f32 to vector<8x128xf32>
    %7 = arith.cmpf ogt, %5, %6 : vector<8x128xf32>
    %cst_6 = arith.constant 0.00999999977 : f32
    %8 = vector.broadcast %cst_6 : f32 to vector<8x128xf32>
    %9 = arith.mulf %8, %5 : vector<8x128xf32>
    %10 = arith.select %7, %5, %9 : vector<8x128xi1>, vector<8x128xf32>
    %c0_7 = arith.constant 0 : index
    %c0_8 = arith.constant 0 : index
    %11 = vector.load %arg4[%c0_7, %c0_8] : memref<128x128xf32, #tpu.memory_space<vmem>>, vector<128x128xf32>
    %cst_9 = arith.constant dense<0.000000e+00> : vector<8x128xf32>
    %12 = tpu.matmul %10, %11, %cst_9 {dimension_numbers = #tpu.dot_dimension_numbers<[1], [0], [0], [1], [0, 0, 1, 1], [], []>} : vector<8x128xf32>, vector<128x128xf32>, vector<8x128xf32> -> vector<8x128xf32>
    %c0_10 = arith.constant 0 : index
    %c0_11 = arith.constant 0 : index
    %13 = vector.load %arg5[%c0_10, %c0_11] : memref<1x128xf32, #tpu.memory_space<vmem>>, vector<1x128xf32>
    %14 = vector.broadcast %13 : vector<1x128xf32> to vector<8x128xf32>
    %15 = arith.addf %12, %14 : vector<8x128xf32>
    %c0_12 = arith.constant 0 : index
    %c0_13 = arith.constant 0 : index
    %16 = vector.load %arg6[%c0_12, %c0_13] : memref<8x128xf32, #tpu.memory_space<vmem>>, vector<8x128xf32>
    tpu.vector_store %arg6[%c0_12, %c0_13], %15 {strides = array<i32>} : memref<8x128xf32, #tpu.memory_space<vmem>>, vector<8x128xf32>,
    return
  }
  func.func @transform_0(%arg0: i32) -> (i32, i32) {
    %c0_i32 = arith.constant 0 : i32
    %c0_i32_0 = arith.constant 0 : i32
    return %arg0, %c0_i32 : i32, i32
  }
  func.func @transform_1(%arg0: i32) -> (i32, i32) {
    %c0_i32 = arith.constant 0 : i32
    %c0_i32_0 = arith.constant 0 : i32
    %c0_i32_1 = arith.constant 0 : i32
    return %c0_i32, %c0_i32_0 : i32, i32
  }
  func.func @transform_2(%arg0: i32) -> (i32, i32) {
    %c0_i32 = arith.constant 0 : i32
    %c0_i32_0 = arith.constant 0 : i32
    %c0_i32_1 = arith.constant 0 : i32
    return %c0_i32, %c0_i32_0 : i32, i32
  }
  func.func @transform_3(%arg0: i32) -> (i32, i32) {
    %c0_i32 = arith.constant 0 : i32
    %c0_i32_0 = arith.constant 0 : i32
    %c0_i32_1 = arith.constant 0 : i32
    return %c0_i32, %c0_i32_0 : i32, i32
  }
  func.func @transform_4(%arg0: i32) -> (i32, i32) {
    %c0_i32 = arith.constant 0 : i32
    %c0_i32_0 = arith.constant 0 : i32
    %c0_i32_1 = arith.constant 0 : i32
    return %c0_i32, %c0_i32_0 : i32, i32
  }
  func.func @transform_5(%arg0: i32) -> (i32, i32) {
    %c0_i32 = arith.constant 0 : i32
    %c0_i32_0 = arith.constant 0 : i32
    return %arg0, %c0_i32 : i32, i32
  }
}

</mosaic_0001>

<llo_original>
// kernel: tpu_custom_call.1
$region0: #{tpu_custom_call.1}
  #allocation0 [shape = 'u32[]', space=smem, size = 0x4, offset = 0x4, fixed_abs, tag = 'smem constant byte address 0x4 - core index']
  #allocation1 [shape = 'u32[144,128]{1,0:T(1,128)}', space=vmem, size = 0x12000, scoped, tag = 'internal scratch']
  %s0 = inlined_call_operand.hbm [shape: f32[8,128], index: 0, kind: input, shape index: {}]
  %s1 = inlined_call_operand.hbm [shape: f32[128,128], index: 1, kind: input, shape index: {}]
  %s2 = inlined_call_operand.vmem [shape: f32[1,128], index: 2, kind: input, shape index: {}]
  %s3 = inlined_call_operand.hbm [shape: f32[128,128], index: 3, kind: input, shape index: {}]
  %s4 = inlined_call_operand.vmem [shape: f32[1,128], index: 4, kind: input, shape index: {}]
  %s5 = inlined_call_operand.hbm [shape: f32[8,128], index: 5, kind: output, shape index: {}]
  %s6 = sld [smem:[#allocation0]]
  $region42: #{tpu_custom_call.1} parent=0
    _
  %s8 = ssub.s32 1, %s6
  %s9 = scalar_select 0, %s8, %s6
  $region1: #{tpu_custom_call.1} parent=0
    #allocation2 [shape = 'u8[4096]{0}', space=vmem, size = 0x1000, scoped, tag = 'input window, operand 0, single buffered']
    #allocation3 [shape = 's32[1]{0}', space=sflag, size = 0x4, scoped, tag = 'scoped memory for tpu_custom_call.1']
    #allocation4 [shape = 's32[1]{0}', space=sflag, size = 0x4, scoped, tag = 'scoped memory for tpu_custom_call.1']
    #allocation5 [shape = 'u8[65536]{0}', space=vmem, size = 0x10000, scoped, tag = 'input window, operand 1, single buffered']
    #allocation6 [shape = 's32[1]{0}', space=sflag, size = 0x4, scoped, tag = 'scoped memory for tpu_custom_call.1']
    #allocation7 [shape = 'u8[65536]{0}', space=vmem, size = 0x10000, scoped, tag = 'input window, operand 3, single buffered']
    #allocation8 [shape = 'u8[4096]{0}', space=vmem, size = 0x1000, scoped, tag = 'output window, operand 0, single buffered']
    %10 = vsyncpa [#allocation3], 0
    %11 = vsyncpa [#allocation6], 0
    %12 = vsyncpa [#allocation4], 0
    // Predicated region
    $region2: #{tpu_custom_call.1} parent=1 // pred_check
      _
    $region3: #{tpu_custom_call.1} parent=1 // pred_check_branch
      %14 = sbr.rel (0) target = $region5
    $region4: #{tpu_custom_call.1} parent=1 // pred_region
      %s16 = ssub.s32 128, 128
      %17 = vsyncadd [#allocation3], %s16
      %s19 = sshll.u32 [#allocation2], 4
      %s20 = int_to_ptr.vmem [resolvable:$true] %s19
      %22 = dma.hbm_to_vmem [thread:$0]  %s0, 128, %s20, [#allocation3]
    $region5: #{tpu_custom_call.1} parent=1 // pred_fallthru
      _
    // Predicated region
    $region6: #{tpu_custom_call.1} parent=1 // pred_check
      _
    $region7: #{tpu_custom_call.1} parent=1 // pred_check_branch
      %24 = sbr.rel (0) target = $region9
    $region8: #{tpu_custom_call.1} parent=1 // pred_region
      %s26 = ssub.s32 2048, 2048
      %27 = vsyncadd [#allocation6], %s26
      %s28 = sshll.u32 [#allocation5], 4
      %s29 = int_to_ptr.vmem [resolvable:$true] %s28
      %34 = dma.hbm_to_vmem [thread:$0]  %s1, 2048, %s29, [#allocation6], 128, 128, 8
    $region9: #{tpu_custom_call.1} parent=1 // pred_fallthru
      _
    // Predicated region
    $region10: #{tpu_custom_call.1} parent=1 // pred_check
      _
    $region11: #{tpu_custom_call.1} parent=1 // pred_check_branch
      %36 = sbr.rel (0) target = $region13
    $region12: #{tpu_custom_call.1} parent=1 // pred_region
      _
    $region13: #{tpu_custom_call.1} parent=1 // pred_fallthru
      _
    // Predicated region
    $region14: #{tpu_custom_call.1} parent=1 // pred_check
      _
    $region15: #{tpu_custom_call.1} parent=1 // pred_check_branch
      %38 = sbr.rel (0) target = $region17
    $region16: #{tpu_custom_call.1} parent=1 // pred_region
      %s40 = ssub.s32 2048, 2048
      %41 = vsyncadd [#allocation6], %s40
      %s42 = sshll.u32 [#allocation7], 4
      %s43 = int_to_ptr.vmem [resolvable:$true] %s42
      %48 = dma.hbm_to_vmem [thread:$0]  %s3, 2048, %s43, [#allocation6], 128, 128, 8
    $region17: #{tpu_custom_call.1} parent=1 // pred_fallthru
      _
    // Predicated region
    $region18: #{tpu_custom_call.1} parent=1 // pred_check
      _
    $region19: #{tpu_custom_call.1} parent=1 // pred_check_branch
      %50 = sbr.rel (0) target = $region21
    $region20: #{tpu_custom_call.1} parent=1 // pred_region
      _
    $region21: #{tpu_custom_call.1} parent=1 // pred_fallthru
      _
    // Predicated region
    $region22: #{tpu_custom_call.1} parent=1 // pred_check
      _
    $region23: #{tpu_custom_call.1} parent=1 // pred_check_branch
      %52 = sbr.rel (0) target = $region25
    $region24: #{tpu_custom_call.1} parent=1 // pred_region
      %53 = dma.done [#allocation3], 128
    $region25: #{tpu_custom_call.1} parent=1 // pred_fallthru
      _
    // Predicated region
    $region26: #{tpu_custom_call.1} parent=1 // pred_check
      _
    $region27: #{tpu_custom_call.1} parent=1 // pred_check_branch
      %55 = sbr.rel (0) target = $region29
    $region28: #{tpu_custom_call.1} parent=1 // pred_region
      %56 = dma.done [#allocation6], 2048
    $region29: #{tpu_custom_call.1} parent=1 // pred_fallthru
      _
    // Predicated region
    $region30: #{tpu_custom_call.1} parent=1 // pred_check
      _
    $region31: #{tpu_custom_call.1} parent=1 // pred_check_branch
      %58 = sbr.rel (0) target = $region33
    $region32: #{tpu_custom_call.1} parent=1 // pred_region
      %59 = dma.done [#allocation6], 2048
    $region33: #{tpu_custom_call.1} parent=1 // pred_fallthru
      _
    %v60 = vld [vmem:[#allocation2] sm:$0xff]
    %v61 = vld [vmem:[#allocation5] sm:$0xff]
    %v62 = vld [vmem:[#allocation5 + $0x8] sm:$0xff]
    %v63 = vld [vmem:[#allocation5 + $0x10] sm:$0xff]
    %v64 = vld [vmem:[#allocation5 + $0x18] sm:$0xff]
    %v65 = vld [vmem:[#allocation5 + $0x20] sm:$0xff]
    %v66 = vld [vmem:[#allocation5 + $0x28] sm:$0xff]
    %v67 = vld [vmem:[#allocation5 + $0x30] sm:$0xff]
    %v68 = vld [vmem:[#allocation5 + $0x38] sm:$0xff]
    %v69 = vld [vmem:[#allocation5 + $0x40] sm:$0xff]
    %v70 = vld [vmem:[#allocation5 + $0x48] sm:$0xff]
    %v71 = vld [vmem:[#allocation5 + $0x50] sm:$0xff]
    %v72 = vld [vmem:[#allocation5 + $0x58] sm:$0xff]
    %v73 = vld [vmem:[#allocation5 + $0x60] sm:$0xff]
    %v74 = vld [vmem:[#allocation5 + $0x68] sm:$0xff]
    %v75 = vld [vmem:[#allocation5 + $0x70] sm:$0xff]
    %v76 = vld [vmem:[#allocation5 + $0x78] sm:$0xff]
    %v77 = vld [vmem:[%s2] sm:$0x1]
    %v79 = vlaneseq
    %v80 = vshrl.u32 %v79, 7
    %v81 = vsub.s32 0, %v80
    %v82 = vrot.slane %v77, %v81
    %84 = vmatprep.subr.mxu0 0.0
    %85 = vmatpush1.msra.mxu0 %v76
    %86 = vmatprep.subr.mxu0 0.0
    %87 = vmatpush1.msra.mxu0 %v75
    %88 = vmatprep.subr.mxu0 0.0
    %89 = vmatpush1.msra.mxu0 %v74
    %90 = vmatprep.subr.mxu0 0.0
    %91 = vmatpush1.msra.mxu0 %v73
    %92 = vmatprep.subr.mxu0 0.0
    %93 = vmatpush1.msra.mxu0 %v72
    %94 = vmatprep.subr.mxu0 0.0
    %95 = vmatpush1.msra.mxu0 %v71
    %96 = vmatprep.subr.mxu0 0.0
    %97 = vmatpush1.msra.mxu0 %v70
    %98 = vmatprep.subr.mxu0 0.0
    %99 = vmatpush1.msra.mxu0 %v69
    %100 = vmatprep.subr.mxu0 0.0
    %101 = vmatpush1.msra.mxu0 %v68
    %102 = vmatprep.subr.mxu0 0.0
    %103 = vmatpush1.msra.mxu0 %v67
    %104 = vmatprep.subr.mxu0 0.0
    %105 = vmatpush1.msra.mxu0 %v66
    %106 = vmatprep.subr.mxu0 0.0
    %107 = vmatpush1.msra.mxu0 %v65
    %108 = vmatprep.subr.mxu0 0.0
    %109 = vmatpush1.msra.mxu0 %v64
    %110 = vmatprep.subr.mxu0 0.0
    %111 = vmatpush1.msra.mxu0 %v63
    %112 = vmatprep.subr.mxu0 0.0
    %113 = vmatpush1.msra.mxu0 %v62
    %114 = vmatprep.subr.mxu0 0.0
    %115 = vmatpush1.msra.mxu0 %v61
    %116 = vmatprep.subr.mxu0 0.0
    %117 = vmatpush2.msra.mxu0 0.0
    %118 = vmatprep.subr.mxu0 0.0
    %119 = vmatpush2.msra.mxu0 0.0
    %120 = vmatprep.subr.mxu0 0.0
    %121 = vmatpush2.msra.mxu0 0.0
    %122 = vmatprep.subr.mxu0 0.0
    %123 = vmatpush2.msra.mxu0 0.0
    %124 = vmatprep.subr.mxu0 0.0
    %125 = vmatpush2.msra.mxu0 0.0
    %126 = vmatprep.subr.mxu0 0.0
    %127 = vmatpush2.msra.mxu0 0.0
    %128 = vmatprep.subr.mxu0 0.0
    %129 = vmatpush2.msra.mxu0 0.0
    %130 = vmatprep.subr.mxu0 0.0
    %131 = vmatpush2.msra.mxu0 0.0
    %132 = vmatprep.subr.mxu0 0.0
    %133 = vmatpush2.msra.mxu0 0.0
    %134 = vmatprep.subr.mxu0 0.0
    %135 = vmatpush2.msra.mxu0 0.0
    %136 = vmatprep.subr.mxu0 0.0
    %137 = vmatpush2.msra.mxu0 0.0
    %138 = vmatprep.subr.mxu0 0.0
    %139 = vmatpush2.msra.mxu0 0.0
    %140 = vmatprep.subr.mxu0 0.0
    %141 = vmatpush2.msra.mxu0 0.0
    %142 = vmatprep.subr.mxu0 0.0
    %143 = vmatpush2.msra.mxu0 0.0
    %144 = vmatprep.subr.mxu0 0.0
    %145 = vmatpush2.msra.mxu0 0.0
    %146 = vmatprep.subr.mxu0 0.0
    %147 = vmatpush2.msra.mxu0 0.0
    %148 = vmatprep.mubr.f32.mxu0 0.0
    %149 = vmatmul.mubr.f32.gmra.mxu0 %v60
    %v150 = vpop.f32.mrf.mxu0
    %v151 = vadd.f32 %v82, %v150
    %v152 = vpop.f32.mrf.mxu0
    %153 = vdwg.mxu0
    %vm154 = vcmp.gt.f32.partialorder %v151, 0.0
    %v155 = vmul.f32 %v151, 0.01
    %v156 = vsel %vm154, %v151, %v155
    %v157 = vld [vmem:[#allocation7] sm:$0xff]
    %v158 = vld [vmem:[#allocation7 + $0x8] sm:$0xff]
    %v159 = vld [vmem:[#allocation7 + $0x10] sm:$0xff]
    %v160 = vld [vmem:[#allocation7 + $0x18] sm:$0xff]
    %v161 = vld [vmem:[#allocation7 + $0x20] sm:$0xff]
    %v162 = vld [vmem:[#allocation7 + $0x28] sm:$0xff]
    %v163 = vld [vmem:[#allocation7 + $0x30] sm:$0xff]
    %v164 = vld [vmem:[#allocation7 + $0x38] sm:$0xff]
    %v165 = vld [vmem:[#allocation7 + $0x40] sm:$0xff]
    %v166 = vld [vmem:[#allocation7 + $0x48] sm:$0xff]
    %v167 = vld [vmem:[#allocation7 + $0x50] sm:$0xff]
    %v168 = vld [vmem:[#allocation7 + $0x58] sm:$0xff]
    %v169 = vld [vmem:[#allocation7 + $0x60] sm:$0xff]
    %v170 = vld [vmem:[#allocation7 + $0x68] sm:$0xff]
    %v171 = vld [vmem:[#allocation7 + $0x70] sm:$0xff]
    %v172 = vld [vmem:[#allocation7 + $0x78] sm:$0xff]
    %v173 = vld [vmem:[%s4] sm:$0x1]
    %v175 = vlaneseq
    %v176 = vshrl.u32 %v175, 7
    %v177 = vsub.s32 0, %v176
    %v178 = vrot.slane %v173, %v177
    %180 = vmatprep.subr.mxu0 0.0
    %181 = vmatpush1.msra.mxu0 %v172
    %182 = vmatprep.subr.mxu0 0.0
    %183 = vmatpush1.msra.mxu0 %v171
    %184 = vmatprep.subr.mxu0 0.0
    %185 = vmatpush1.msra.mxu0 %v170
    %186 = vmatprep.subr.mxu0 0.0
    %187 = vmatpush1.msra.mxu0 %v169
    %188 = vmatprep.subr.mxu0 0.0
    %189 = vmatpush1.msra.mxu0 %v168
    %190 = vmatprep.subr.mxu0 0.0
    %191 = vmatpush1.msra.mxu0 %v167
    %192 = vmatprep.subr.mxu0 0.0
    %193 = vmatpush1.msra.mxu0 %v166
    %194 = vmatprep.subr.mxu0 0.0
    %195 = vmatpush1.msra.mxu0 %v165
    %196 = vmatprep.subr.mxu0 0.0
    %197 = vmatpush1.msra.mxu0 %v164
    %198 = vmatprep.subr.mxu0 0.0
    %199 = vmatpush1.msra.mxu0 %v163
    %200 = vmatprep.subr.mxu0 0.0
    %201 = vmatpush1.msra.mxu0 %v162
    %202 = vmatprep.subr.mxu0 0.0
    %203 = vmatpush1.msra.mxu0 %v161
    %204 = vmatprep.subr.mxu0 0.0
    %205 = vmatpush1.msra.mxu0 %v160
    %206 = vmatprep.subr.mxu0 0.0
    %207 = vmatpush1.msra.mxu0 %v159
    %208 = vmatprep.subr.mxu0 0.0
    %209 = vmatpush1.msra.mxu0 %v158
    %210 = vmatprep.subr.mxu0 0.0
    %211 = vmatpush1.msra.mxu0 %v157
    %212 = vmatprep.subr.mxu0 0.0
    %213 = vmatpush2.msra.mxu0 0.0
    %214 = vmatprep.subr.mxu0 0.0
    %215 = vmatpush2.msra.mxu0 0.0
    %216 = vmatprep.subr.mxu0 0.0
    %217 = vmatpush2.msra.mxu0 0.0
    %218 = vmatprep.subr.mxu0 0.0
    %219 = vmatpush2.msra.mxu0 0.0
    %220 = vmatprep.subr.mxu0 0.0
    %221 = vmatpush2.msra.mxu0 0.0
    %222 = vmatprep.subr.mxu0 0.0
    %223 = vmatpush2.msra.mxu0 0.0
    %224 = vmatprep.subr.mxu0 0.0
    %225 = vmatpush2.msra.mxu0 0.0
    %226 = vmatprep.subr.mxu0 0.0
    %227 = vmatpush2.msra.mxu0 0.0
    %228 = vmatprep.subr.mxu0 0.0
    %229 = vmatpush2.msra.mxu0 0.0
    %230 = vmatprep.subr.mxu0 0.0
    %231 = vmatpush2.msra.mxu0 0.0
    %232 = vmatprep.subr.mxu0 0.0
    %233 = vmatpush2.msra.mxu0 0.0
    %234 = vmatprep.subr.mxu0 0.0
    %235 = vmatpush2.msra.mxu0 0.0
    %236 = vmatprep.subr.mxu0 0.0
    %237 = vmatpush2.msra.mxu0 0.0
    %238 = vmatprep.subr.mxu0 0.0
    %239 = vmatpush2.msra.mxu0 0.0
    %240 = vmatprep.subr.mxu0 0.0
    %241 = vmatpush2.msra.mxu0 0.0
    %242 = vmatprep.subr.mxu0 0.0
    %243 = vmatpush2.msra.mxu0 0.0
    %244 = vmatprep.mubr.f32.mxu0 0.0
    %245 = vmatmul.mubr.f32.gmra.mxu0 %v156
    %v246 = vpop.f32.mrf.mxu0
    %v247 = vadd.f32 %v178, %v246
    %v248 = vpop.f32.mrf.mxu0
    %249 = vdwg.mxu0
    %250 = vst [vmem:[#allocation8] sm:$0xff] %v247
    // Predicated region
    $region34: #{tpu_custom_call.1} parent=1 // pred_check
      _
    $region35: #{tpu_custom_call.1} parent=1 // pred_check_branch
      %252 = sbr.rel (0) target = $region37
    $region36: #{tpu_custom_call.1} parent=1 // pred_region
      %s254 = ssub.s32 128, 128
      %255 = vsyncadd [#allocation4], %s254
      %s257 = sshll.u32 [#allocation8], 4
      %s258 = int_to_ptr.vmem [resolvable:$true] %s257
      %260 = dma.vmem_to_hbm [thread:$0]  %s258, 128, %s5, [#allocation4]
    $region37: #{tpu_custom_call.1} parent=1 // pred_fallthru
      _
    // Predicated region
    $region38: #{tpu_custom_call.1} parent=1 // pred_check
      _
    $region39: #{tpu_custom_call.1} parent=1 // pred_check_branch
      %262 = sbr.rel (0) target = $region41
    $region40: #{tpu_custom_call.1} parent=1 // pred_region
      %263 = dma.done [#allocation4], 128
    $region41: #{tpu_custom_call.1} parent=1 // pred_fallthru
      _
    %264 = vsyncpa [#allocation3], 1
    %265 = vsyncpa [#allocation6], 1
    %266 = vsyncpa [#allocation4], 1

</llo_original>
